<compile_context>
chip_gen: v6e
topology: v6e:2x2x1
jax: 0.10.0
libtpu: 0.0.40
codegen_flags: <defaults>
</compile_context>

<pallas_src>
import functools
import math

import jax
import jax.numpy as jnp
import numpy as np
from jax.experimental import pallas as pl
from jax.experimental.pallas import tpu as pltpu

_MIB = 1024 * 1024
# Per-grid-step buffered VMEM budget (all double-buffered blocks together).
# Well under v7x's 64 MiB physical VMEM per TensorCore; trivially safe on
# v5e/v6e (128 MiB) and puts individual x blocks around the ~8 MiB sweet spot.
_TILE_VMEM_BUDGET = 32 * _MIB
_VMEM_LIMIT_CAP = 48 * _MIB            # leave headroom below v7x's 64 MiB
# At/above this table size the gather moves from VPU select-accumulate to a
# one-hot MXU matmul (vector-extended slot, otherwise idle in this kernel).
_ONEHOT_MATMUL_MIN_REPEAT = 8


def _round_up(x, m):
    return ((x + m - 1) // m) * m


def _pick_row_tile(n_rows, vmem_bytes_per_row, *, budget, min_programs=1):
    """Tile size along a second-minor (sublane) axis.

    Multiple of 8 (sublane granularity), never exceeds n_rows, keeps the
    buffered VMEM for one grid step under `budget`, and — when this axis is
    the only source of grid parallelism — small enough to give at least
    `min_programs` grid steps.  Partial trailing blocks are fine (pl.cdiv).
    """
    if n_rows <= 8:
        return n_rows                                   # tiny axis: one full block
    cap = max(8, (budget // max(vmem_bytes_per_row, 1)) // 8 * 8)
    t = min(cap, (n_rows // 8) * 8)                     # multiple of 8, <= n_rows
    if min_programs > 1:
        t = min(t, max(8, _round_up(pl.cdiv(n_rows, min_programs), 8)))
    return max(t, 8)


# ---------------------------------------------------------------------------
# Kernels
# ---------------------------------------------------------------------------

def _depth_pe_pertoken_kernel(idx_ref, x_ref, emb_ref, o_ref, *, n_repeat):
    """One (batch, T-tile) block: o = x + emb_table[idx].

    idx_ref: (1, tT, 1) int32   per-token depth index
    x_ref:   (1, tT, C)         activations (C on the lane axis)
    emb_ref: (n_repeat, C) f32  full embedding table (resident in VMEM)
    o_ref:   (1, tT, C)
    """
    x = x_ref[0].astype(jnp.float32)                    # (tT, C)
    idx = idx_ref[0]                                    # (tT, 1) int32
    table = emb_ref[...].astype(jnp.float32)            # (n_repeat, C)

    if n_repeat >= _ONEHOT_MATMUL_MIN_REPEAT:
        # One-hot gather on the MXU: keeps the VPU free and the number of
        # passes over the (tT, C) block independent of n_repeat.
        tT = x.shape[0]
        iota_r = jax.lax.broadcasted_iota(jnp.int32, (tT, n_repeat), 1)
        onehot = (idx == iota_r).astype(jnp.float32)    # (tT, n_repeat)
        emb = jnp.dot(onehot, table, preferred_element_type=jnp.float32)
        out = x + emb
    else:
        # Small static table: exact unrolled select-accumulate (pure VPU,
        # hidden under the HBM stream at small n_repeat).
        out = x
        for r in range(n_repeat):
            row = table[r:r + 1, :]                     # (1, C)
            out = out + jnp.where(idx == r, row, 0.0)   # -> (tT, C)

    o_ref[0] = out.astype(o_ref.dtype)


def _depth_pe_scalar_kernel(idx_smem_ref, x_ref, emb_ref, o_ref):
    """Scalar-depth fast path: o = x + emb_table[idx] (one row for all tokens).

    idx_smem_ref: (1,) int32 scalar-prefetched into SMEM
    x_ref:        (tR, L)    lane-dense activations view
    emb_ref:      (n_repeat, 1, L) resident table; dynamic major-axis read
    o_ref:        (tR, L)
    """
    i = idx_smem_ref[0]
    row = emb_ref[i]                                    # (1, L) dynamic major index
    o_ref[...] = (x_ref[...].astype(jnp.float32)
                  + row.astype(jnp.float32)).astype(o_ref.dtype)


# ---------------------------------------------------------------------------
# Wrappers
# ---------------------------------------------------------------------------

def _forward_scalar_index(x, emb_table, idx_scalar):
    B, T, C = x.shape
    n_repeat = emb_table.shape[0]
    itemsize = x.dtype.itemsize
    total = B * T * C

    # Present a lane-dense 2-D view (last dim a multiple of 128) so stores are
    # unmasked full-width vst; the embedding row is tiled to match.
    if C % 128 == 0:
        L, reps = C, 1
    else:
        L = (C * 128) // math.gcd(C, 128)               # lcm(C, 128)
        reps = L // C
        if total % L != 0:
            L, reps = C, 1                              # fall back: lane-sparse
    rows = total // L
    x2 = x.reshape(rows, L)
    table = emb_table if reps == 1 else jnp.tile(emb_table, (1, reps))
    table3 = table.reshape(n_repeat, 1, L)              # major-axis row indexing

    row_vmem = 4 * L * itemsize                         # x in + out, double-buffered
    tR = _pick_row_tile(rows, row_vmem, budget=_TILE_VMEM_BUDGET, min_programs=2)
    grid = (pl.cdiv(rows, tR),)

    needed = tR * row_vmem + n_repeat * 8 * L * 4 + 2 * _MIB
    vmem_limit = int(min(_VMEM_LIMIT_CAP, max(32 * _MIB, needed)))

    cost = pl.CostEstimate(
        flops=total,
        transcendentals=0,
        bytes_accessed=2 * total * itemsize + n_repeat * L * emb_table.dtype.itemsize,
    )

    out2 = pl.pallas_call(
        _depth_pe_scalar_kernel,
        out_shape=jax.ShapeDtypeStruct((rows, L), x.dtype),
        grid_spec=pltpu.PrefetchScalarGridSpec(
            num_scalar_prefetch=1,
            grid=grid,
            in_specs=[
                pl.BlockSpec((tR, L), lambda r, idx_s: (r, 0)),           # x view
                pl.BlockSpec((n_repeat, 1, L), lambda r, idx_s: (0, 0, 0)),  # table
            ],
            out_specs=pl.BlockSpec((tR, L), lambda r, idx_s: (r, 0)),
        ),
        compiler_params=pltpu.CompilerParams(
            dimension_semantics=("parallel",),
            vmem_limit_bytes=vmem_limit,
        ),
        cost_estimate=cost,
    )(idx_scalar.reshape(1), x2, table3)
    return out2.reshape(B, T, C)


def _forward_per_token(x, emb_table, idx_bt):
    B, T, C = x.shape
    n_repeat = emb_table.shape[0]
    itemsize = x.dtype.itemsize

    idx3 = idx_bt.reshape(B, T, 1)

    # Per-row VMEM cost: double-buffered x in + out blocks plus the lane-padded
    # (tT, 1) int32 idx column (each element pads to a full 128-lane row).
    # TODO(synk): for C < 128, repack (B,T,C)->(B,T/G,G*C) lane-dense groups to
    # avoid masked partial stores; typical n_embd (multiple of 128) is fine.
    row_vmem = 4 * C * itemsize + 2 * 128 * 4
    min_programs = 2 if B == 1 else 1   # keep both v7x TCs / the pipeline busy
    tT = _pick_row_tile(T, row_vmem, budget=_TILE_VMEM_BUDGET,
                        min_programs=min_programs)
    grid = (B, pl.cdiv(T, tT))

    table_vmem = n_repeat * max(C, 128) * 4
    needed = tT * row_vmem + table_vmem + 2 * _MIB
    vmem_limit = int(min(_VMEM_LIMIT_CAP, max(32 * _MIB, needed)))

    kernel = functools.partial(_depth_pe_pertoken_kernel, n_repeat=n_repeat)

    cost = pl.CostEstimate(
        flops=B * T * C,
        transcendentals=0,
        bytes_accessed=(2 * B * T * C * itemsize + B * T * 4
                        + n_repeat * C * emb_table.dtype.itemsize),
    )

    return pl.pallas_call(
        kernel,
        out_shape=jax.ShapeDtypeStruct((B, T, C), x.dtype),
        grid=grid,
        in_specs=[
            pl.BlockSpec((1, tT, 1), lambda b, t: (b, t, 0)),      # indices
            pl.BlockSpec((1, tT, C), lambda b, t: (b, t, 0)),      # x
            pl.BlockSpec((n_repeat, C), lambda b, t: (0, 0)),      # table (resident)
        ],
        out_specs=pl.BlockSpec((1, tT, C), lambda b, t: (b, t, 0)),
        compiler_params=pltpu.CompilerParams(
            dimension_semantics=("parallel", "parallel"),
            vmem_limit_bytes=vmem_limit,
        ),
        cost_estimate=cost,
    )(idx3, x, emb_table)


def depth_positional_encoder_forward(x, emb_table, indices):
    """Pallas implementation of LearnedDepthPositionalEncoder.forward.

    Args:
      x:         (B, T, C) activations.
      emb_table: (n_repeat, C) nn.Embedding weight.
      indices:   int32 depth index; scalar (0-d) or broadcastable to (B, T).

    Returns:
      (B, T, C): x + emb_table[indices]
    """
    B, T, C = x.shape
    n_repeat, c_e = emb_table.shape
    assert c_e == C, "embedding dim must match x's last dim"

    idx = jnp.asarray(indices, jnp.int32)
    if idx.ndim == 0:
        return _forward_scalar_index(x, emb_table, idx)
    return _forward_per_token(x, emb_table, jnp.broadcast_to(idx, (B, T)))


if __name__ == "__main__":
    key = jax.random.PRNGKey(0)
    kx, kw, ki, kx2, kw2, ki2 = jax.random.split(key, 6)

    # --- per-token depth indices, small n_repeat (select-accumulate path) ---
    B, T, C, n_repeat = 2, 8, 32, 4
    x = jax.random.normal(kx, (B, T, C), dtype=jnp.float32)
    emb_table = jax.random.normal(kw, (n_repeat, C), dtype=jnp.float32) * 0.02
    indices = jax.random.randint(ki, (B, T), 0, n_repeat, dtype=jnp.int32)

    out = depth_positional_encoder_forward(x, emb_table, indices)
    jax.block_until_ready(out)
    ref = x + jnp.take(emb_table, indices, axis=0)
    np.testing.assert_allclose(np.asarray(out), np.asarray(ref),
                               rtol=1e-6, atol=1e-6)
    assert out.shape == (B, T, C) and out.dtype == jnp.float32

    # --- scalar depth index (decode-time `x + embs(step)` fast path) ---
    out_s = depth_positional_encoder_forward(x, emb_table, jnp.int32(2))
    jax.block_until_ready(out_s)
    ref_s = x + emb_table[2][None, None, :]
    np.testing.assert_allclose(np.asarray(out_s), np.asarray(ref_s),
                               rtol=1e-6, atol=1e-6)

    # --- per-token, B=1 (forced grid split), lane-dense C, one-hot MXU path,
    #     T not divisible by the tile (partial trailing block) ---
    B2, T2, C2, n_rep2 = 1, 20, 128, 8
    x2 = jax.random.normal(kx2, (B2, T2, C2), dtype=jnp.float32)
    emb2 = jax.random.normal(kw2, (n_rep2, C2), dtype=jnp.float32) * 0.02
    idx2 = jax.random.randint(ki2, (B2, T2), 0, n_rep2, dtype=jnp.int32)

    out2 = depth_positional_encoder_forward(x2, emb2, idx2)
    jax.block_until_ready(out2)
    ref2 = x2 + jnp.take(emb2, idx2, axis=0)
    np.testing.assert_allclose(np.asarray(out2), np.asarray(ref2),
                               rtol=1e-6, atol=1e-6)

    # --- scalar index on the lane-dense (C % 128 == 0) config ---
    out2s = depth_positional_encoder_forward(x2, emb2, jnp.int32(5))
    jax.block_until_ready(out2s)
    ref2s = x2 + emb2[5][None, None, :]
    np.testing.assert_allclose(np.asarray(out2s), np.asarray(ref2s),
                               rtol=1e-6, atol=1e-6)

    print("KERNEL_OK")
</pallas_src>

<mosaic_0001>
module attributes {stable_mosaic.version = 11 : i64} {
  func.func @_depth_pe_pertoken_kernel(%arg0: i32, %arg1: i32, %arg2: memref<1x8x1xi32, #tpu.memory_space<vmem>>, %arg3: memref<1x8x32xf32, #tpu.memory_space<vmem>>, %arg4: memref<4x32xf32, #tpu.memory_space<vmem>>, %arg5: memref<1x8x32xf32, #tpu.memory_space<vmem>>) attributes {dimension_semantics = [#tpu.dimension_semantics<parallel>, #tpu.dimension_semantics<parallel>], iteration_bounds = array<i64: 2, 1>, scalar_prefetch = 0 : i64, scratch_operands = 0 : i64, tpu.core_type = #tpu.core_type<tc>, window_params = [{transform_indices = @transform_0, window_bounds = array<i64: 1, 8, 1>}, {transform_indices = @transform_1, window_bounds = array<i64: 1, 8, 32>}, {pipeline_mode = #tpu.pipeline_mode<synchronous>, transform_indices = @transform_2, window_bounds = array<i64: 4, 32>}, {transform_indices = @transform_3, window_bounds = array<i64: 1, 8, 32>}]} {
    %c0 = arith.constant 0 : index
    %c0_0 = arith.constant 0 : index
    %c0_1 = arith.constant 0 : index
    %0 = vector.load %arg3[%c0, %c0_0, %c0_1] : memref<1x8x32xf32, #tpu.memory_space<vmem>>, vector<1x8x32xf32>
    %1 = vector.shape_cast %0 : vector<1x8x32xf32> to vector<8x32xf32>
    %c0_2 = arith.constant 0 : index
    %c0_3 = arith.constant 0 : index
    %c0_4 = arith.constant 0 : index
    %2 = vector.load %arg2[%c0_2, %c0_3, %c0_4] : memref<1x8x1xi32, #tpu.memory_space<vmem>>, vector<1x8x1xi32>
    %3 = vector.shape_cast %2 : vector<1x8x1xi32> to vector<8x1xi32>
    %c0_5 = arith.constant 0 : index
    %c0_6 = arith.constant 0 : index
    %4 = vector.load %arg4[%c0_5, %c0_6] : memref<4x32xf32, #tpu.memory_space<vmem>>, vector<4x32xf32>
    %5 = vector.extract_strided_slice %4 {offsets = [0, 0], sizes = [1, 32], strides = [1, 1]} : vector<4x32xf32> to vector<1x32xf32>
    %c0_i32 = arith.constant 0 : i32
    %6 = vector.broadcast %c0_i32 : i32 to vector<8x1xi32>
    %7 = arith.cmpi eq, %3, %6 : vector<8x1xi32>
    %cst = arith.constant 0.000000e+00 : f32
    %8 = vector.shape_cast %7 : vector<8x1xi1> to vector<8x1xi1>
    %9 = vector.broadcast %8 : vector<8x1xi1> to vector<8x32xi1>
    %10 = vector.shape_cast %5 : vector<1x32xf32> to vector<1x32xf32>
    %11 = vector.broadcast %10 : vector<1x32xf32> to vector<8x32xf32>
    %12 = vector.broadcast %cst : f32 to vector<8x32xf32>
    %13 = arith.select %9, %11, %12 : vector<8x32xi1>, vector<8x32xf32>
    %14 = arith.addf %1, %13 : vector<8x32xf32>
    %15 = vector.extract_strided_slice %4 {offsets = [1, 0], sizes = [1, 32], strides = [1, 1]} : vector<4x32xf32> to vector<1x32xf32>
    %c1_i32 = arith.constant 1 : i32
    %16 = vector.broadcast %c1_i32 : i32 to vector<8x1xi32>
    %17 = arith.cmpi eq, %3, %16 : vector<8x1xi32>
    %cst_7 = arith.constant 0.000000e+00 : f32
    %18 = vector.shape_cast %17 : vector<8x1xi1> to vector<8x1xi1>
    %19 = vector.broadcast %18 : vector<8x1xi1> to vector<8x32xi1>
    %20 = vector.shape_cast %15 : vector<1x32xf32> to vector<1x32xf32>
    %21 = vector.broadcast %20 : vector<1x32xf32> to vector<8x32xf32>
    %22 = vector.broadcast %cst_7 : f32 to vector<8x32xf32>
    %23 = arith.select %19, %21, %22 : vector<8x32xi1>, vector<8x32xf32>
    %24 = arith.addf %14, %23 : vector<8x32xf32>
    %25 = vector.extract_strided_slice %4 {offsets = [2, 0], sizes = [1, 32], strides = [1, 1]} : vector<4x32xf32> to vector<1x32xf32>
    %c2_i32 = arith.constant 2 : i32
    %26 = vector.broadcast %c2_i32 : i32 to vector<8x1xi32>
    %27 = arith.cmpi eq, %3, %26 : vector<8x1xi32>
    %cst_8 = arith.constant 0.000000e+00 : f32
    %28 = vector.shape_cast %27 : vector<8x1xi1> to vector<8x1xi1>
    %29 = vector.broadcast %28 : vector<8x1xi1> to vector<8x32xi1>
    %30 = vector.shape_cast %25 : vector<1x32xf32> to vector<1x32xf32>
    %31 = vector.broadcast %30 : vector<1x32xf32> to vector<8x32xf32>
    %32 = vector.broadcast %cst_8 : f32 to vector<8x32xf32>
    %33 = arith.select %29, %31, %32 : vector<8x32xi1>, vector<8x32xf32>
    %34 = arith.addf %24, %33 : vector<8x32xf32>
    %35 = vector.extract_strided_slice %4 {offsets = [3, 0], sizes = [1, 32], strides = [1, 1]} : vector<4x32xf32> to vector<1x32xf32>
    %c3_i32 = arith.constant 3 : i32
    %36 = vector.broadcast %c3_i32 : i32 to vector<8x1xi32>
    %37 = arith.cmpi eq, %3, %36 : vector<8x1xi32>
    %cst_9 = arith.constant 0.000000e+00 : f32
    %38 = vector.shape_cast %37 : vector<8x1xi1> to vector<8x1xi1>
    %39 = vector.broadcast %38 : vector<8x1xi1> to vector<8x32xi1>
    %40 = vector.shape_cast %35 : vector<1x32xf32> to vector<1x32xf32>
    %41 = vector.broadcast %40 : vector<1x32xf32> to vector<8x32xf32>
    %42 = vector.broadcast %cst_9 : f32 to vector<8x32xf32>
    %43 = arith.select %39, %41, %42 : vector<8x32xi1>, vector<8x32xf32>
    %44 = arith.addf %34, %43 : vector<8x32xf32>
    %c0_10 = arith.constant 0 : index
    %c0_11 = arith.constant 0 : index
    %c0_12 = arith.constant 0 : index
    %45 = vector.load %arg5[%c0_10, %c0_11, %c0_12] : memref<1x8x32xf32, #tpu.memory_space<vmem>>, vector<1x8x32xf32>
    %46 = vector.shape_cast %45 : vector<1x8x32xf32> to vector<8x32xf32>
    %47 = vector.shape_cast %44 : vector<8x32xf32> to vector<1x8x32xf32>
    tpu.vector_store %arg5[%c0_10, %c0_11, %c0_12], %47 {strides = array<i32>} : memref<1x8x32xf32, #tpu.memory_space<vmem>>, vector<1x8x32xf32>,
    return
  }
  func.func @transform_0(%arg0: i32, %arg1: i32) -> (i32, i32, i32) {
    %c0_i32 = arith.constant 0 : i32
    %c0_i32_0 = arith.constant 0 : i32
    return %arg0, %arg1, %c0_i32 : i32, i32, i32
  }
  func.func @transform_1(%arg0: i32, %arg1: i32) -> (i32, i32, i32) {
    %c0_i32 = arith.constant 0 : i32
    %c0_i32_0 = arith.constant 0 : i32
    return %arg0, %arg1, %c0_i32 : i32, i32, i32
  }
  func.func @transform_2(%arg0: i32, %arg1: i32) -> (i32, i32) {
    %c0_i32 = arith.constant 0 : i32
    %c0_i32_0 = arith.constant 0 : i32
    %c0_i32_1 = arith.constant 0 : i32
    return %c0_i32, %c0_i32_0 : i32, i32
  }
  func.func @transform_3(%arg0: i32, %arg1: i32) -> (i32, i32, i32) {
    %c0_i32 = arith.constant 0 : i32
    %c0_i32_0 = arith.constant 0 : i32
    return %arg0, %arg1, %c0_i32 : i32, i32, i32
  }
}

</mosaic_0001>

<llo_original>
// kernel: tpu_custom_call.1
$region0: #{tpu_custom_call.1}
  #allocation0 [shape = 'u32[]', space=smem, size = 0x4, offset = 0x4, fixed_abs, tag = 'smem constant byte address 0x4 - core index']
  #allocation1 [shape = 'u32[144,128]{1,0:T(1,128)}', space=vmem, size = 0x12000, scoped, tag = 'internal scratch']
  %s0 = inlined_call_operand.vmem [shape: s32[2,8,1], index: 0, kind: input, shape index: {}]
  %s1 = inlined_call_operand.vmem [shape: f32[2,8,32], index: 1, kind: input, shape index: {}]
  %s2 = inlined_call_operand.vmem [shape: f32[4,32], index: 2, kind: input, shape index: {}]
  %s3 = inlined_call_operand.hbm [shape: f32[2,8,32], index: 3, kind: output, shape index: {}]
  %s4 = sld [smem:[#allocation0]]
  $region45: #{tpu_custom_call.1} parent=0
    _
  %s6 = ssub.s32 1, %s4
  %s7 = scalar_select 0, %s6, %s4
  $region1: #{tpu_custom_call.1} parent=0
    #allocation2 [shape = 'u8[8192]{0}', space=vmem, size = 0x2000, scoped, tag = 'output window, operand 0']
    #allocation3 [shape = 's32[2]{0}', space=sflag, size = 0x8, scoped, tag = 'scoped memory for tpu_custom_call.1']
    %8 = vsyncpa [#allocation3], 0
    %s9 = scalar_lea.sflag [#allocation3], 1
    %10 = vsyncpa %s9, 0
    loop: start=0, step=1, limit=4
    $region2: #{tpu_custom_call.1} parent=1 // loop_pre_header
      _
    $region3: #{tpu_custom_call.1} parent=1 // loop_header
      %s12 = sphi 0, %s16
      %p13 = scmp.ge.s32.totalorder %s12, 4
      %s19 = sphi 0, %s31
      %s20 = sphi 0, %s27
      %s21 = sphi 0, %s19
      %s22 = sphi 0, %s20
      %s23 = sphi 0, %s21
      %s24 = sphi 0, %s22
      %s36 = sphi 0, %s38
      %s39 = sphi 0, %s36
      %s40 = sphi 0, %s39
      %s56 = sphi 0, %s40
      %s64 = sphi 0, %s66
      %s67 = sphi 0, %s64
      %s68 = sphi 0, %s67
      %s84 = sphi 0, %s68
      %s88 = sphi 0, %s88
      %s90 = sphi 0, %s88
      %s91 = sphi 0, %s90
      %s105 = sphi 0, %s91
      %s113 = sphi 0, %s115
      %s116 = sphi 0, %s113
      %s117 = sphi 0, %s116
      %s133 = sphi 0, %s117
    $region4: #{tpu_custom_call.1} parent=1 // loop_header_branch
      %15 = sbr.rel (%p13) target = $region8
    $region5: #{tpu_custom_call.1} parent=1 // loop_body
      %s17 = ssub.s32 %s12, 1
      %s18 = ssub.s32 %s12, 2
      %s25 = sadd.s32 1, %s20
      %p26 = scmp.ge.s32.totalorder %s25, 1
      %s27 = scalar_select %p26, 0, %s25
      %s28 = sadd.s32 1, %s19
      %s29 = scalar_select %p26, %s28, %s19
      %p30 = scmp.ge.s32.totalorder %s29, 2
      %s31 = scalar_select %p30, 0, %s29
      %s32 = ssub.s32 %s19, %s31
      %s33 = ssub.s32 %s20, %s27
      %s34 = sor.u32 %s32, %s33
      %p35 = scmp.eq.s32.totalorder %s34, 0
      %s37 = sadd.s32 %s36, 1
      %s38 = scalar_select %p35, %s36, %s37
      %p41 = pneg %p35
      %p42 = scmp.eq.s32.totalorder %s12, 1
      %p43 = por %p41, %p42
      %p44 = scmp.ne.s32.totalorder %s36, %s39
      %p45 = scmp.eq.s32.totalorder %s12, 0
      %p46 = por %p44, %p45
      %p47 = scmp.ne.s32.totalorder %s36, %s39
      %p48 = scmp.eq.s32.totalorder %s17, 1
      %p49 = por %p47, %p48
      %p50 = scmp.ne.s32.totalorder %s39, %s40
      %p51 = scmp.eq.s32.totalorder %s17, 0
      %p52 = por %p50, %p51
      %p53 = scmp.ne.s32.totalorder %s39, %s40
      %p54 = scmp.eq.s32.totalorder %s18, 1
      %p55 = por %p53, %p54
      %p57 = scmp.ne.s32.totalorder %s40, %s56
      %p58 = scmp.eq.s32.totalorder %s18, 0
      %p59 = por %p57, %p58
      %s60 = ssub.s32 %s19, %s31
      %s61 = ssub.s32 %s20, %s27
      %s62 = sor.u32 %s60, %s61
      %p63 = scmp.eq.s32.totalorder %s62, 0
      %s65 = sadd.s32 %s64, 1
      %s66 = scalar_select %p63, %s64, %s65
      %p69 = pneg %p63
      %p70 = scmp.eq.s32.totalorder %s12, 1
      %p71 = por %p69, %p70
      %p72 = scmp.ne.s32.totalorder %s64, %s67
      %p73 = scmp.eq.s32.totalorder %s12, 0
      %p74 = por %p72, %p73
      %p75 = scmp.ne.s32.totalorder %s64, %s67
      %p76 = scmp.eq.s32.totalorder %s17, 1
      %p77 = por %p75, %p76
      %p78 = scmp.ne.s32.totalorder %s67, %s68
      %p79 = scmp.eq.s32.totalorder %s17, 0
      %p80 = por %p78, %p79
      %p81 = scmp.ne.s32.totalorder %s67, %s68
      %p82 = scmp.eq.s32.totalorder %s18, 1
      %p83 = por %p81, %p82
      %p85 = scmp.ne.s32.totalorder %s68, %s84
      %p86 = scmp.eq.s32.totalorder %s18, 0
      %p87 = por %p85, %p86
      %s89 = sadd.s32 %s88, 1
      %p92 = scmp.eq.s32.totalorder %s12, 1
      %p93 = scmp.ne.s32.totalorder %s88, %s90
      %p94 = scmp.eq.s32.totalorder %s12, 0
      %p95 = por %p93, %p94
      %p96 = scmp.ne.s32.totalorder %s88, %s90
      %p97 = scmp.eq.s32.totalorder %s17, 1
      %p98 = por %p96, %p97
      %p99 = scmp.ne.s32.totalorder %s90, %s91
      %p100 = scmp.eq.s32.totalorder %s17, 0
      %p101 = por %p99, %p100
      %p102 = scmp.ne.s32.totalorder %s90, %s91
      %p103 = scmp.eq.s32.totalorder %s18, 1
      %p104 = por %p102, %p103
      %p106 = scmp.ne.s32.totalorder %s91, %s105
      %p107 = scmp.eq.s32.totalorder %s18, 0
      %p108 = por %p106, %p107
      %s109 = ssub.s32 %s19, %s31
      %s110 = ssub.s32 %s20, %s27
      %s111 = sor.u32 %s109, %s110
      %p112 = scmp.eq.s32.totalorder %s111, 0
      %s114 = sadd.s32 %s113, 1
      %s115 = scalar_select %p112, %s113, %s114
      %p118 = pneg %p112
      %p119 = scmp.eq.s32.totalorder %s12, 1
      %p120 = por %p118, %p119
      %p121 = scmp.ne.s32.totalorder %s113, %s116
      %p122 = scmp.eq.s32.totalorder %s12, 0
      %p123 = por %p121, %p122
      %p124 = scmp.ne.s32.totalorder %s113, %s116
      %p125 = scmp.eq.s32.totalorder %s17, 1
      %p126 = por %p124, %p125
      %p127 = scmp.ne.s32.totalorder %s116, %s117
      %p128 = scmp.eq.s32.totalorder %s17, 0
      %p129 = por %p127, %p128
      %p130 = scmp.ne.s32.totalorder %s116, %s117
      %p131 = scmp.eq.s32.totalorder %s18, 1
      %p132 = por %p130, %p131
      %p134 = scmp.ne.s32.totalorder %s117, %s133
      %p135 = scmp.eq.s32.totalorder %s18, 0
      %p136 = por %p134, %p135
      %p137 = scmp.le.s32.totalorder 1, %s12
      %p138 = scmp.lt.s32.totalorder %s12, 3
      %p139 = pnand %p137, %p138
      %p140 = pneg %p139
      // Predicated region
      $region9: #{tpu_custom_call.1} parent=5 // pred_check
        _
      $region10: #{tpu_custom_call.1} parent=5 // pred_check_branch
        %142 = sbr.rel (%p139) target = $region12
      $region11: #{tpu_custom_call.1} parent=5 // pred_region
        %s143 = ssub.s32 %s12, 1
        // Predicated region
        $region13: #{tpu_custom_call.1} parent=11 // pred_check
          %p144 = pneg %p101
        $region14: #{tpu_custom_call.1} parent=11 // pred_check_branch
          %146 = sbr.rel (%p144) target = $region16
        $region15: #{tpu_custom_call.1} parent=11 // pred_region
          _
        $region16: #{tpu_custom_call.1} parent=11 // pred_fallthru
          _
      $region12: #{tpu_custom_call.1} parent=5 // pred_fallthru
        _
      %p147 = scmp.lt.s32.totalorder %s12, 2
      // Predicated region
      $region17: #{tpu_custom_call.1} parent=5 // pred_check
        %p148 = pneg %p147
      $region18: #{tpu_custom_call.1} parent=5 // pred_check_branch
        %150 = sbr.rel (%p148) target = $region20
      $region19: #{tpu_custom_call.1} parent=5 // pred_region
        // Predicated region
        $region21: #{tpu_custom_call.1} parent=19 // pred_check
          %p151 = pneg %p46
        $region22: #{tpu_custom_call.1} parent=19 // pred_check_branch
          %153 = sbr.rel (%p151) target = $region24
        $region23: #{tpu_custom_call.1} parent=19 // pred_region
          %p154 = scmp.lt.s32.totalorder %s19, 1
          %s155 = scalar_select %p154, %s19, 1
          %p156 = scmp.lt.s32.totalorder %s20, 0
          %s157 = scalar_select %p156, %s20, 0
          %s158 = sadd.s32 %s157, %s155
          %s159 = smul.addr %s158, 8
          %s160 = scalar_lea.vmem %s0, %s159
        $region24: #{tpu_custom_call.1} parent=19 // pred_fallthru
          _
        // Predicated region
        $region25: #{tpu_custom_call.1} parent=19 // pred_check
          %p161 = pneg %p74
        $region26: #{tpu_custom_call.1} parent=19 // pred_check_branch
          %163 = sbr.rel (%p161) target = $region28
        $region27: #{tpu_custom_call.1} parent=19 // pred_region
          %p164 = scmp.lt.s32.totalorder %s19, 1
          %s165 = scalar_select %p164, %s19, 1
          %p166 = scmp.lt.s32.totalorder %s20, 0
          %s167 = scalar_select %p166, %s20, 0
          %s168 = sadd.s32 %s167, %s165
          %s169 = smul.addr %s168, 8
          %s170 = scalar_lea.vmem %s1, %s169
        $region28: #{tpu_custom_call.1} parent=19 // pred_fallthru
          _
      $region20: #{tpu_custom_call.1} parent=5 // pred_fallthru
        _
      %p171 = scmp.le.s32.totalorder 1, %s12
      %p172 = scmp.lt.s32.totalorder %s12, 3
      %p173 = pnand %p171, %p172
      %p174 = pneg %p173
      // Predicated region
      $region29: #{tpu_custom_call.1} parent=5 // pred_check
        _
      $region30: #{tpu_custom_call.1} parent=5 // pred_check_branch
        %176 = sbr.rel (%p173) target = $region32
      $region31: #{tpu_custom_call.1} parent=5 // pred_region
        %s177 = ssub.s32 %s12, 1
        %p178 = scmp.lt.s32.totalorder %s21, 1
        %s179 = scalar_select %p178, %s21, 1
        %p180 = scmp.lt.s32.totalorder %s22, 0
        %s181 = scalar_select %p180, %s22, 0
        %s182 = sadd.s32 %s181, %s179
        %s183 = smul.addr %s182, 8
        %s184 = scalar_lea.vmem %s0, %s183
        %p185 = pneg %p52
        %p186 = pneg %p49
        %p187 = scmp.lt.s32.totalorder %s21, 1
        %s188 = scalar_select %p187, %s21, 1
        %p189 = scmp.lt.s32.totalorder %s22, 0
        %s190 = scalar_select %p189, %s22, 0
        %s191 = sadd.s32 %s190, %s188
        %s192 = smul.addr %s191, 8
        %s193 = scalar_lea.vmem %s1, %s192
        %p194 = pneg %p80
        %p195 = pneg %p77
        %p196 = pneg %p101
        %p197 = pneg %p98
        %p198 = pneg %p129
        %p199 = pneg %p126
        %s200 = sand.u32 %s116, 1
        %s201 = scalar_lea.sflag [#allocation3], %s200
        %s202 = sand.u32 %s116, 1
        %s203 = smul.addr %s202, 8
        %s204 = scalar_lea.vmem [#allocation2], %s203
        %p205 = scmp.lt.s32.totalorder %s21, 1
        %s206 = scalar_select %p205, %s21, 1
        %p207 = scmp.lt.s32.totalorder %s22, 0
        %s208 = scalar_select %p207, %s22, 0
        %s209 = sadd.s32 %s208, %s206
        %s210 = smul.addr %s209, 8
        %s211 = scalar_lea.vmem %s0, %s210
        %p212 = scmp.lt.s32.totalorder %s21, 1
        %s213 = scalar_select %p212, %s21, 1
        %p214 = scmp.lt.s32.totalorder %s22, 0
        %s215 = scalar_select %p214, %s22, 0
        %s216 = sadd.s32 %s215, %s213
        %s217 = smul.addr %s216, 8
        %s218 = scalar_lea.vmem %s1, %s217
        %v219 = vld [vmem:[%s218] sm:$0xff]
        %v220 = vld [vmem:[%s211] sm:$0xff]
        %v221 = vld [vmem:[%s2] sm:$0xf]
        %vm222 = vcmp.eq.s32.totalorder %v220, 0
        %v223 = vsel %vm222, 1, 0
        %224 = vset.pattern.permute.xlu0 0
        %225 = vperm.xlu0 %224, %v223
        %v226 = vpop.permute.xlu0 %225
        %vm227 = vcmp.eq.s32.totalorder %v226, 1
        %v228 = vlaneseq
        %v229 = vshrl.u32 %v228, 7
        %v230 = vsub.s32 0, %v229
        %v231 = vrot.slane %v221, %v230
        %v232 = vsel %vm227, %v231, 0.0
        %v233 = vadd.f32 %v219, %v232
        %vm234 = vcmp.eq.s32.totalorder %v220, 1
        %v235 = vsel %vm234, 1, 0
        %236 = vset.pattern.permute.xlu0 0
        %237 = vperm.xlu0 %236, %v235
        %v238 = vpop.permute.xlu0 %237
        %vm239 = vcmp.eq.s32.totalorder %v238, 1
        %v240 = vlaneseq
        %v241 = vshrl.u32 %v240, 7
        %v242 = vsub.s32 1, %v241
        %v243 = vrot.slane %v221, %v242
        %v244 = vsel %vm239, %v243, 0.0
        %v245 = vadd.f32 %v233, %v244
        %vm246 = vcmp.eq.s32.totalorder %v220, 2
        %v247 = vsel %vm246, 1, 0
        %248 = vset.pattern.permute.xlu0 0
        %249 = vperm.xlu0 %248, %v247
        %v250 = vpop.permute.xlu0 %249
        %vm251 = vcmp.eq.s32.totalorder %v250, 1
        %v252 = vlaneseq
        %v253 = vshrl.u32 %v252, 7
        %v254 = vsub.s32 2, %v253
        %v255 = vrot.slane %v221, %v254
        %v256 = vsel %vm251, %v255, 0.0
        %v257 = vadd.f32 %v245, %v256
        %vm258 = vcmp.eq.s32.totalorder %v220, 3
        %v259 = vsel %vm258, 1, 0
        %260 = vset.pattern.permute.xlu0 0
        %261 = vperm.xlu0 %260, %v259
        %v262 = vpop.permute.xlu0 %261
        %vm263 = vcmp.eq.s32.totalorder %v262, 1
        %v264 = vlaneseq
        %v265 = vshrl.u32 %v264, 7
        %v266 = vsub.s32 3, %v265
        %v267 = vrot.slane %v221, %v266
        %v268 = vsel %vm263, %v267, 0.0
        %v269 = vadd.f32 %v257, %v268
        %vm270 = vcmask 261120
        %271 = vst.msk [vmem:[%s204] sm:$0xff] %vm270, %v269
        %s272 = sand.u32 %s116, 1
        %s273 = scalar_lea.sflag [#allocation3], %s272
        %s274 = sand.u32 %s116, 1
        %s275 = smul.addr %s274, 8
        %s276 = scalar_lea.vmem [#allocation2], %s275
        // Predicated region
        $region33: #{tpu_custom_call.1} parent=31 // pred_check
          %p277 = pneg %p126
        $region34: #{tpu_custom_call.1} parent=31 // pred_check_branch
          %279 = sbr.rel (%p277) target = $region36
        $region35: #{tpu_custom_call.1} parent=31 // pred_region
          %s281 = ssub.s32 128, 128
          %282 = vsyncadd %s273, %s281
          %s283 = sadd.s32 %s22, %s21
          %s284 = smul.addr %s283, 128
          %s285 = scalar_lea.hbm %s3, %s284
          %s287 = sshll.u32 %s276, 4
          %s288 = int_to_ptr.vmem [resolvable:$true] %s287
          %290 = dma.vmem_to_hbm [thread:$0]  %s288, 128, %s285, %s273
        $region36: #{tpu_custom_call.1} parent=31 // pred_fallthru
          _
      $region32: #{tpu_custom_call.1} parent=5 // pred_fallthru
        _
      %p291 = scmp.le.s32.totalorder 2, %s12
      // Predicated region
      $region37: #{tpu_custom_call.1} parent=5 // pred_check
        %p292 = pneg %p291
      $region38: #{tpu_custom_call.1} parent=5 // pred_check_branch
        %294 = sbr.rel (%p292) target = $region40
      $region39: #{tpu_custom_call.1} parent=5 // pred_region
        %s295 = ssub.s32 %s12, 2
        // Predicated region
        $region41: #{tpu_custom_call.1} parent=39 // pred_check
          %p296 = pneg %p132
        $region42: #{tpu_custom_call.1} parent=39 // pred_check_branch
          %298 = sbr.rel (%p296) target = $region44
        $region43: #{tpu_custom_call.1} parent=39 // pred_region
          %s299 = sand.u32 %s117, 1
          %s300 = scalar_lea.sflag [#allocation3], %s299
          %s301 = sand.u32 %s117, 1
          %s302 = smul.addr %s301, 8
          %s303 = scalar_lea.vmem [#allocation2], %s302
          %304 = dma.done %s300, 128
        $region44: #{tpu_custom_call.1} parent=39 // pred_fallthru
          _
      $region40: #{tpu_custom_call.1} parent=5 // pred_fallthru
        _
    $region6: #{tpu_custom_call.1} parent=1 // loop_footer
      %s16 = sadd.s32 1, %s12
    $region7: #{tpu_custom_call.1} parent=1 // loop_footer_branch
      %11 = sbr.rel target = $region3
    $region8: #{tpu_custom_call.1} parent=1 // loop_exit
      _
    %305 = vsyncpa [#allocation3], 1
    %s306 = scalar_lea.sflag [#allocation3], 1
    %307 = vsyncpa %s306, 1

</llo_original>
